<compile_context>
chip_gen: v5e
topology: v5e:2x2
jax: 0.10.0
libtpu: 0.0.40
codegen_flags: <defaults>
</compile_context>

<pallas_src>
import numpy as np
import jax
import jax.numpy as jnp
from jax import lax
from jax.experimental import pallas as pl
from jax.experimental.pallas import tpu as pltpu

# ---- static sizes (small shapes consistent with the module) -----------------
H = W = 16            # input_dim
CIN = 1               # in_channels
C1 = 4                # out_channels
C2 = 8                # out_channels * 2
H2, W2 = H // 2, W // 2
H4, W4 = H // 4, W // 4
FLAT = H4 * W4 * C2          # 128
FC1 = FLAT // 4              # 32
LATENT = 32                  # latent_dim
B = 2                        # batch
B_TILE = 2                   # batch per grid step (== B here; use 8 for production
                             # so M = B_TILE*H ~ 128 fills the MXU)


# ---- host-side constant builders (one-time, numpy) ---------------------------
def _shift(n, d):
    """(n,n) selection: out[i] = in[i+d] if in range else 0."""
    m = np.zeros((n, n), np.float32)
    for i in range(n):
        if 0 <= i + d < n:
            m[i, i + d] = 1.0
    return m


def _pick_even(n):
    m = np.zeros((n // 2, n), np.float32)
    m[np.arange(n // 2), 2 * np.arange(n // 2)] = 1.0
    return m


def _pick_odd(n):
    m = np.zeros((n // 2, n), np.float32)
    m[np.arange(n // 2), 2 * np.arange(n // 2) + 1] = 1.0
    return m


def _conv_col_mats(w, width):
    """Compose column taps + 'same' padding + conv weights for each kernel row kh.

    w: (CO, CI, 3, 3) torch-layout weight.  Returns 3 matrices of shape
    (CI*width, CO*width) so that  conv = sum_kh (row_shift_kh @ act) @ mat_kh.
    """
    co_n, ci_n, kh_n, kw_n = w.shape
    mats = []
    for kh in range(kh_n):
        m = np.zeros((ci_n * width, co_n * width), np.float32)
        for kw in range(kw_n):
            t = _shift(width, kw - 1).T          # [w_in, w_out] = 1 iff w_in == w_out+kw-1
            for co in range(co_n):
                for ci in range(ci_n):
                    m[ci * width:(ci + 1) * width,
                      co * width:(co + 1) * width] += float(w[co, ci, kh, kw]) * t
        mats.append(m)
    return mats


def _pack(entries):
    """Pack named 2-D constants into one (rows, lanes) f32 slab.

    Each entry starts at an 8-aligned row offset, columns start at lane 0.
    Returns (slab as jnp array, {name: (row_offset, rows, cols)}).
    """
    max_c = max(m.shape[1] for _, m in entries)
    lanes = ((max_c + 127) // 128) * 128
    offs, blocks, cur = {}, [], 0
    for name, m in entries:
        m = np.asarray(m, np.float32)
        r, c = m.shape
        rpad = ((r + 7) // 8) * 8
        blk = np.zeros((rpad, lanes), np.float32)
        blk[:r, :c] = m
        blocks.append(blk)
        offs[name] = (cur, r, c)
        cur += rpad
    slab = np.concatenate(blocks, axis=0)
    return jnp.asarray(slab), offs


def prepare_params(w1, b1, w2, b2, wfc1, bfc1, wfc2, bfc2, b_tile=B_TILE):
    """Host-side, one-time: compose every constant matrix and pack into one slab."""
    w1 = np.asarray(w1, np.float32); b1 = np.asarray(b1, np.float32)
    w2 = np.asarray(w2, np.float32); b2 = np.asarray(b2, np.float32)
    wfc1 = np.asarray(wfc1, np.float32); bfc1 = np.asarray(bfc1, np.float32)
    wfc2 = np.asarray(wfc2, np.float32); bfc2 = np.asarray(bfc2, np.float32)

    eye_b = np.eye(b_tile, dtype=np.float32)
    eye_c1 = np.eye(C1, dtype=np.float32)
    eye_c2 = np.eye(C2, dtype=np.float32)

    entries = []
    # conv1: per-kh row shifts (block-diag over batch) + composed column/weight mats
    a1_mats = _conv_col_mats(w1, W)
    for kh in range(3):
        entries.append((f"R1_{kh}", np.kron(eye_b, _shift(H, kh - 1))))
        entries.append((f"A1_{kh}", a1_mats[kh]))
    entries.append(("b1", np.repeat(b1, W)[None, :]))                    # (1, C1*W)
    # maxpool 1 (rows then lanes)
    entries.append(("re1", np.kron(eye_b, _pick_even(H))))
    entries.append(("ro1", np.kron(eye_b, _pick_odd(H))))
    entries.append(("ce1", np.kron(eye_c1, _pick_even(W).T)))
    entries.append(("co1", np.kron(eye_c1, _pick_odd(W).T)))
    # conv2
    a2_mats = _conv_col_mats(w2, W2)
    for kh in range(3):
        entries.append((f"R2_{kh}", np.kron(eye_b, _shift(H2, kh - 1))))
        entries.append((f"A2_{kh}", a2_mats[kh]))
    entries.append(("b2", np.repeat(b2, W2)[None, :]))                   # (1, C2*W2)
    # maxpool 2
    entries.append(("re2", np.kron(eye_b, _pick_even(H2))))
    entries.append(("ro2", np.kron(eye_b, _pick_odd(H2))))
    entries.append(("ce2", np.kron(eye_c2, _pick_even(W2).T)))
    entries.append(("co2", np.kron(eye_c2, _pick_odd(W2).T)))
    # flatten folded into fc1: per-h row pick + per-h permuted fc1 weight block
    wf1r = wfc1.reshape(FC1, C2, H4, W4)
    for h in range(H4):
        sel = np.zeros((1, H4), np.float32)
        sel[0, h] = 1.0
        entries.append((f"rp_{h}", np.kron(eye_b, sel)))                 # (bt, bt*H4)
        entries.append((f"wf1_{h}",
                        np.transpose(wf1r[:, :, h, :], (1, 2, 0)).reshape(C2 * W4, FC1)))
    entries.append(("bf1", bfc1[None, :]))
    # fc2
    entries.append(("wf2", wfc2.T.copy()))
    entries.append(("bf2", bfc2[None, :]))

    return _pack(entries)


# ---- kernel ------------------------------------------------------------------
def _make_kernel(offs):
    """Fused encoder kernel; `offs` maps name -> (row_offset, rows, cols) in the slab."""

    def rd(c_ref, name):
        o, r, c = offs[name]
        return c_ref[o:o + r, 0:c]          # static, 8-row-aligned, lane-0-based read

    def kernel(x_ref, c_ref, o_ref):
        def mm(a, b):
            return jnp.dot(a, b, preferred_element_type=jnp.float32)

        x = x_ref[...]                                                    # (bt*H, W)

        # conv1 ('same') as 3 accumulating MXU matmuls -> relu
        acc = mm(mm(rd(c_ref, "R1_0"), x), rd(c_ref, "A1_0"))
        for kh in (1, 2):
            acc += mm(mm(rd(c_ref, f"R1_{kh}"), x), rd(c_ref, f"A1_{kh}"))
        h1 = jnp.maximum(acc + rd(c_ref, "b1"), 0.0)                      # (bt*H, C1*W)

        # maxpool 2x2 (rows via selection matmuls, then lanes)
        r1 = jnp.maximum(mm(rd(c_ref, "re1"), h1), mm(rd(c_ref, "ro1"), h1))
        a1 = jnp.maximum(mm(r1, rd(c_ref, "ce1")), mm(r1, rd(c_ref, "co1")))  # (bt*H2, C1*W2)

        # conv2 ('same') as 3 accumulating MXU matmuls -> relu
        acc2 = mm(mm(rd(c_ref, "R2_0"), a1), rd(c_ref, "A2_0"))
        for kh in (1, 2):
            acc2 += mm(mm(rd(c_ref, f"R2_{kh}"), a1), rd(c_ref, f"A2_{kh}"))
        h2 = jnp.maximum(acc2 + rd(c_ref, "b2"), 0.0)                     # (bt*H2, C2*W2)

        # maxpool 2x2
        r2 = jnp.maximum(mm(rd(c_ref, "re2"), h2), mm(rd(c_ref, "ro2"), h2))
        a2 = jnp.maximum(mm(r2, rd(c_ref, "ce2")), mm(r2, rd(c_ref, "co2")))  # (bt*H4, C2*W4)

        # flatten folded into fc1 (accumulating matmuls) -> relu
        f1 = mm(mm(rd(c_ref, "rp_0"), a2), rd(c_ref, "wf1_0"))
        for h in range(1, H4):
            f1 += mm(mm(rd(c_ref, f"rp_{h}"), a2), rd(c_ref, f"wf1_{h}"))
        f1 = jnp.maximum(f1 + rd(c_ref, "bf1"), 0.0)                      # (bt, FC1)

        # fc2 -> relu
        o_ref[...] = jnp.maximum(mm(f1, rd(c_ref, "wf2")) + rd(c_ref, "bf2"), 0.0)

    return kernel


def _flops_per_tile(bt):
    mb, mb2, mb4 = bt * H, bt * H2, bt * H4
    f = 3 * 2 * (mb * mb * W + mb * W * C1 * W)                             # conv1
    f += 2 * 2 * mb2 * mb * C1 * W + 2 * 2 * mb2 * C1 * W * C1 * W2         # pool1
    f += 3 * 2 * (mb2 * mb2 * C1 * W2 + mb2 * C1 * W2 * C2 * W2)            # conv2
    f += 2 * 2 * mb4 * mb2 * C2 * W2 + 2 * 2 * mb4 * C2 * W2 * C2 * W4      # pool2
    f += H4 * 2 * (bt * mb4 * C2 * W4 + bt * C2 * W4 * FC1)                 # fc1
    f += 2 * bt * FC1 * LATENT                                              # fc2
    return int(f)


def make_encoder(offs, b_tile=B_TILE):
    kernel = _make_kernel(offs)

    @jax.jit
    def encoder_forward(x, slab):
        b = x.shape[0]
        assert x.shape == (b, CIN, H, W) and b % b_tile == 0
        x2d = x.reshape(b * H, W)            # CIN == 1: pure relabel, no data movement
        n_tiles = b // b_tile
        slab_rows, slab_lanes = slab.shape

        return pl.pallas_call(
            kernel,
            out_shape=jax.ShapeDtypeStruct((b, LATENT), jnp.float32),
            grid=(n_tiles,),
            in_specs=[
                # activations: one batch tile per grid step (pipelined by Pallas)
                pl.BlockSpec((b_tile * H, W), lambda i: (i, 0)),
                # constants + weights: same block every step -> stays resident in VMEM
                pl.BlockSpec((slab_rows, slab_lanes), lambda i: (0, 0)),
            ],
            out_specs=pl.BlockSpec((b_tile, LATENT), lambda i: (i, 0)),
            compiler_params=pltpu.CompilerParams(
                dimension_semantics=("parallel",)),    # v7x: both TCs split the batch
            cost_estimate=pl.CostEstimate(
                flops=n_tiles * _flops_per_tile(b_tile),
                transcendentals=0,
                bytes_accessed=4 * (x2d.size + slab.size + b * LATENT)),
        )(x2d, slab)

    return encoder_forward


# ---- pure-JAX reference (verification) ---------------------------------------
def encoder_reference(x, w1, b1, w2, b2, wfc1, bfc1, wfc2, bfc2):
    dn = ("NCHW", "OIHW", "NCHW")
    y = lax.conv_general_dilated(x, w1, (1, 1), "SAME", dimension_numbers=dn)
    y = jnp.maximum(y + b1[None, :, None, None], 0.0)
    y = lax.reduce_window(y, -jnp.inf, lax.max, (1, 1, 2, 2), (1, 1, 2, 2), "VALID")
    y = lax.conv_general_dilated(y, w2, (1, 1), "SAME", dimension_numbers=dn)
    y = jnp.maximum(y + b2[None, :, None, None], 0.0)
    y = lax.reduce_window(y, -jnp.inf, lax.max, (1, 1, 2, 2), (1, 1, 2, 2), "VALID")
    y = y.reshape(y.shape[0], -1)
    y = jnp.maximum(y @ wfc1.T + bfc1, 0.0)
    y = jnp.maximum(y @ wfc2.T + bfc2, 0.0)
    return y


if __name__ == "__main__":
    key = jax.random.PRNGKey(0)
    ks = jax.random.split(key, 9)

    # deterministic synthetic parameters (PyTorch layouts)
    w1 = jax.random.normal(ks[0], (C1, CIN, 3, 3), jnp.float32) * 0.2
    b1 = jax.random.normal(ks[1], (C1,), jnp.float32) * 0.1
    w2 = jax.random.normal(ks[2], (C2, C1, 3, 3), jnp.float32) * 0.1
    b2 = jax.random.normal(ks[3], (C2,), jnp.float32) * 0.1
    wfc1 = jax.random.normal(ks[4], (FC1, FLAT), jnp.float32) * 0.05
    bfc1 = jax.random.normal(ks[5], (FC1,), jnp.float32) * 0.1
    wfc2 = jax.random.normal(ks[6], (LATENT, FC1), jnp.float32) * 0.1
    bfc2 = jax.random.normal(ks[7], (LATENT,), jnp.float32) * 0.1

    slab, offs = prepare_params(w1, b1, w2, b2, wfc1, bfc1, wfc2, bfc2, b_tile=B_TILE)
    encoder_forward = make_encoder(offs, b_tile=B_TILE)

    x = jax.random.normal(ks[8], (B, CIN, H, W), jnp.float32)

    out = jax.block_until_ready(encoder_forward(x, slab))
    ref = jax.block_until_ready(
        encoder_reference(x, w1, b1, w2, b2, wfc1, bfc1, wfc2, bfc2))

    assert out.shape == (B, LATENT), out.shape
    err = float(jnp.max(jnp.abs(out - ref)))
    assert jnp.allclose(out, ref, rtol=1e-4, atol=1e-4), err
    print("KERNEL_OK")
</pallas_src>

<mosaic_0001>
module attributes {stable_mosaic.version = 11 : i64} {
  func.func @kernel(%arg0: i32, %arg1: memref<32x16xf32, #tpu.memory_space<vmem>>, %arg2: memref<816x128xf32, #tpu.memory_space<vmem>>, %arg3: memref<2x32xf32, #tpu.memory_space<vmem>>) attributes {dimension_semantics = [#tpu.dimension_semantics<parallel>], iteration_bounds = array<i64: 1>, scalar_prefetch = 0 : i64, scratch_operands = 0 : i64, tpu.core_type = #tpu.core_type<tc>, window_params = [{transform_indices = @transform_0, window_bounds = array<i64: 32, 16>}, {pipeline_mode = #tpu.pipeline_mode<synchronous>, transform_indices = @transform_1, window_bounds = array<i64: 816, 128>}, {transform_indices = @transform_2, window_bounds = array<i64: 2, 32>}]} {
    %c0 = arith.constant 0 : index
    %c0_0 = arith.constant 0 : index
    %0 = vector.load %arg1[%c0, %c0_0] : memref<32x16xf32, #tpu.memory_space<vmem>>, vector<32x16xf32>
    %c0_1 = arith.constant 0 : index
    %c0_2 = arith.constant 0 : index
    %1 = vector.load %arg2[%c0_1, %c0_2] : memref<816x128xf32, #tpu.memory_space<vmem>>, vector<32x32xf32>
    %cst = arith.constant dense<0.000000e+00> : vector<32x16xf32>
    %2 = tpu.matmul %1, %0, %cst {dimension_numbers = #tpu.dot_dimension_numbers<[1], [0], [0], [1], [0, 0, 1, 1], [], []>} : vector<32x32xf32>, vector<32x16xf32>, vector<32x16xf32> -> vector<32x16xf32>
    %c32 = arith.constant 32 : index
    %c0_3 = arith.constant 0 : index
    %3 = vector.load %arg2[%c32, %c0_3] : memref<816x128xf32, #tpu.memory_space<vmem>>, vector<16x64xf32>
    %cst_4 = arith.constant dense<0.000000e+00> : vector<32x64xf32>
    %4 = tpu.matmul %2, %3, %cst_4 {dimension_numbers = #tpu.dot_dimension_numbers<[1], [0], [0], [1], [0, 0, 1, 1], [], []>} : vector<32x16xf32>, vector<16x64xf32>, vector<32x64xf32> -> vector<32x64xf32>
    %c48 = arith.constant 48 : index
    %c0_5 = arith.constant 0 : index
    %5 = vector.load %arg2[%c48, %c0_5] : memref<816x128xf32, #tpu.memory_space<vmem>>, vector<32x32xf32>
    %cst_6 = arith.constant dense<0.000000e+00> : vector<32x16xf32>
    %6 = tpu.matmul %5, %0, %cst_6 {dimension_numbers = #tpu.dot_dimension_numbers<[1], [0], [0], [1], [0, 0, 1, 1], [], []>} : vector<32x32xf32>, vector<32x16xf32>, vector<32x16xf32> -> vector<32x16xf32>
    %c80 = arith.constant 80 : index
    %c0_7 = arith.constant 0 : index
    %7 = vector.load %arg2[%c80, %c0_7] : memref<816x128xf32, #tpu.memory_space<vmem>>, vector<16x64xf32>
    %cst_8 = arith.constant dense<0.000000e+00> : vector<32x64xf32>
    %8 = tpu.matmul %6, %7, %cst_8 {dimension_numbers = #tpu.dot_dimension_numbers<[1], [0], [0], [1], [0, 0, 1, 1], [], []>} : vector<32x16xf32>, vector<16x64xf32>, vector<32x64xf32> -> vector<32x64xf32>
    %9 = arith.addf %4, %8 : vector<32x64xf32>
    %c96 = arith.constant 96 : index
    %c0_9 = arith.constant 0 : index
    %10 = vector.load %arg2[%c96, %c0_9] : memref<816x128xf32, #tpu.memory_space<vmem>>, vector<32x32xf32>
    %cst_10 = arith.constant dense<0.000000e+00> : vector<32x16xf32>
    %11 = tpu.matmul %10, %0, %cst_10 {dimension_numbers = #tpu.dot_dimension_numbers<[1], [0], [0], [1], [0, 0, 1, 1], [], []>} : vector<32x32xf32>, vector<32x16xf32>, vector<32x16xf32> -> vector<32x16xf32>
    %c128 = arith.constant 128 : index
    %c0_11 = arith.constant 0 : index
    %12 = vector.load %arg2[%c128, %c0_11] : memref<816x128xf32, #tpu.memory_space<vmem>>, vector<16x64xf32>
    %cst_12 = arith.constant dense<0.000000e+00> : vector<32x64xf32>
    %13 = tpu.matmul %11, %12, %cst_12 {dimension_numbers = #tpu.dot_dimension_numbers<[1], [0], [0], [1], [0, 0, 1, 1], [], []>} : vector<32x16xf32>, vector<16x64xf32>, vector<32x64xf32> -> vector<32x64xf32>
    %14 = arith.addf %9, %13 : vector<32x64xf32>
    %c144 = arith.constant 144 : index
    %c0_13 = arith.constant 0 : index
    %15 = vector.load %arg2[%c144, %c0_13] : memref<816x128xf32, #tpu.memory_space<vmem>>, vector<1x64xf32>
    %16 = vector.broadcast %15 : vector<1x64xf32> to vector<32x64xf32>
    %17 = arith.addf %14, %16 : vector<32x64xf32>
    %cst_14 = arith.constant 0.000000e+00 : f32
    %18 = vector.broadcast %cst_14 : f32 to vector<32x64xf32>
    %19 = arith.maximumf %17, %18 : vector<32x64xf32>
    %c152 = arith.constant 152 : index
    %c0_15 = arith.constant 0 : index
    %20 = vector.load %arg2[%c152, %c0_15] : memref<816x128xf32, #tpu.memory_space<vmem>>, vector<16x32xf32>
    %cst_16 = arith.constant dense<0.000000e+00> : vector<16x64xf32>
    %21 = tpu.matmul %20, %19, %cst_16 {dimension_numbers = #tpu.dot_dimension_numbers<[1], [0], [0], [1], [0, 0, 1, 1], [], []>} : vector<16x32xf32>, vector<32x64xf32>, vector<16x64xf32> -> vector<16x64xf32>
    %c168 = arith.constant 168 : index
    %c0_17 = arith.constant 0 : index
    %22 = vector.load %arg2[%c168, %c0_17] : memref<816x128xf32, #tpu.memory_space<vmem>>, vector<16x32xf32>
    %cst_18 = arith.constant dense<0.000000e+00> : vector<16x64xf32>
    %23 = tpu.matmul %22, %19, %cst_18 {dimension_numbers = #tpu.dot_dimension_numbers<[1], [0], [0], [1], [0, 0, 1, 1], [], []>} : vector<16x32xf32>, vector<32x64xf32>, vector<16x64xf32> -> vector<16x64xf32>
    %24 = arith.maximumf %21, %23 : vector<16x64xf32>
    %c184 = arith.constant 184 : index
    %c0_19 = arith.constant 0 : index
    %25 = vector.load %arg2[%c184, %c0_19] : memref<816x128xf32, #tpu.memory_space<vmem>>, vector<64x32xf32>
    %cst_20 = arith.constant dense<0.000000e+00> : vector<16x32xf32>
    %26 = tpu.matmul %24, %25, %cst_20 {dimension_numbers = #tpu.dot_dimension_numbers<[1], [0], [0], [1], [0, 0, 1, 1], [], []>} : vector<16x64xf32>, vector<64x32xf32>, vector<16x32xf32> -> vector<16x32xf32>
    %c248 = arith.constant 248 : index
    %c0_21 = arith.constant 0 : index
    %27 = vector.load %arg2[%c248, %c0_21] : memref<816x128xf32, #tpu.memory_space<vmem>>, vector<64x32xf32>
    %cst_22 = arith.constant dense<0.000000e+00> : vector<16x32xf32>
    %28 = tpu.matmul %24, %27, %cst_22 {dimension_numbers = #tpu.dot_dimension_numbers<[1], [0], [0], [1], [0, 0, 1, 1], [], []>} : vector<16x64xf32>, vector<64x32xf32>, vector<16x32xf32> -> vector<16x32xf32>
    %29 = arith.maximumf %26, %28 : vector<16x32xf32>
    %c312 = arith.constant 312 : index
    %c0_23 = arith.constant 0 : index
    %30 = vector.load %arg2[%c312, %c0_23] : memref<816x128xf32, #tpu.memory_space<vmem>>, vector<16x16xf32>
    %cst_24 = arith.constant dense<0.000000e+00> : vector<16x32xf32>
    %31 = tpu.matmul %30, %29, %cst_24 {dimension_numbers = #tpu.dot_dimension_numbers<[1], [0], [0], [1], [0, 0, 1, 1], [], []>} : vector<16x16xf32>, vector<16x32xf32>, vector<16x32xf32> -> vector<16x32xf32>
    %c328 = arith.constant 328 : index
    %c0_25 = arith.constant 0 : index
    %32 = vector.load %arg2[%c328, %c0_25] : memref<816x128xf32, #tpu.memory_space<vmem>>, vector<32x64xf32>
    %cst_26 = arith.constant dense<0.000000e+00> : vector<16x64xf32>
    %33 = tpu.matmul %31, %32, %cst_26 {dimension_numbers = #tpu.dot_dimension_numbers<[1], [0], [0], [1], [0, 0, 1, 1], [], []>} : vector<16x32xf32>, vector<32x64xf32>, vector<16x64xf32> -> vector<16x64xf32>
    %c360 = arith.constant 360 : index
    %c0_27 = arith.constant 0 : index
    %34 = vector.load %arg2[%c360, %c0_27] : memref<816x128xf32, #tpu.memory_space<vmem>>, vector<16x16xf32>
    %cst_28 = arith.constant dense<0.000000e+00> : vector<16x32xf32>
    %35 = tpu.matmul %34, %29, %cst_28 {dimension_numbers = #tpu.dot_dimension_numbers<[1], [0], [0], [1], [0, 0, 1, 1], [], []>} : vector<16x16xf32>, vector<16x32xf32>, vector<16x32xf32> -> vector<16x32xf32>
    %c376 = arith.constant 376 : index
    %c0_29 = arith.constant 0 : index
    %36 = vector.load %arg2[%c376, %c0_29] : memref<816x128xf32, #tpu.memory_space<vmem>>, vector<32x64xf32>
    %cst_30 = arith.constant dense<0.000000e+00> : vector<16x64xf32>
    %37 = tpu.matmul %35, %36, %cst_30 {dimension_numbers = #tpu.dot_dimension_numbers<[1], [0], [0], [1], [0, 0, 1, 1], [], []>} : vector<16x32xf32>, vector<32x64xf32>, vector<16x64xf32> -> vector<16x64xf32>
    %38 = arith.addf %33, %37 : vector<16x64xf32>
    %c408 = arith.constant 408 : index
    %c0_31 = arith.constant 0 : index
    %39 = vector.load %arg2[%c408, %c0_31] : memref<816x128xf32, #tpu.memory_space<vmem>>, vector<16x16xf32>
    %cst_32 = arith.constant dense<0.000000e+00> : vector<16x32xf32>
    %40 = tpu.matmul %39, %29, %cst_32 {dimension_numbers = #tpu.dot_dimension_numbers<[1], [0], [0], [1], [0, 0, 1, 1], [], []>} : vector<16x16xf32>, vector<16x32xf32>, vector<16x32xf32> -> vector<16x32xf32>
    %c424 = arith.constant 424 : index
    %c0_33 = arith.constant 0 : index
    %41 = vector.load %arg2[%c424, %c0_33] : memref<816x128xf32, #tpu.memory_space<vmem>>, vector<32x64xf32>
    %cst_34 = arith.constant dense<0.000000e+00> : vector<16x64xf32>
    %42 = tpu.matmul %40, %41, %cst_34 {dimension_numbers = #tpu.dot_dimension_numbers<[1], [0], [0], [1], [0, 0, 1, 1], [], []>} : vector<16x32xf32>, vector<32x64xf32>, vector<16x64xf32> -> vector<16x64xf32>
    %43 = arith.addf %38, %42 : vector<16x64xf32>
    %c456 = arith.constant 456 : index
    %c0_35 = arith.constant 0 : index
    %44 = vector.load %arg2[%c456, %c0_35] : memref<816x128xf32, #tpu.memory_space<vmem>>, vector<1x64xf32>
    %45 = vector.broadcast %44 : vector<1x64xf32> to vector<16x64xf32>
    %46 = arith.addf %43, %45 : vector<16x64xf32>
    %cst_36 = arith.constant 0.000000e+00 : f32
    %47 = vector.broadcast %cst_36 : f32 to vector<16x64xf32>
    %48 = arith.maximumf %46, %47 : vector<16x64xf32>
    %c464 = arith.constant 464 : index
    %c0_37 = arith.constant 0 : index
    %49 = vector.load %arg2[%c464, %c0_37] : memref<816x128xf32, #tpu.memory_space<vmem>>, vector<8x16xf32>
    %cst_38 = arith.constant dense<0.000000e+00> : vector<8x64xf32>
    %50 = tpu.matmul %49, %48, %cst_38 {dimension_numbers = #tpu.dot_dimension_numbers<[1], [0], [0], [1], [0, 0, 1, 1], [], []>} : vector<8x16xf32>, vector<16x64xf32>, vector<8x64xf32> -> vector<8x64xf32>
    %c472 = arith.constant 472 : index
    %c0_39 = arith.constant 0 : index
    %51 = vector.load %arg2[%c472, %c0_39] : memref<816x128xf32, #tpu.memory_space<vmem>>, vector<8x16xf32>
    %cst_40 = arith.constant dense<0.000000e+00> : vector<8x64xf32>
    %52 = tpu.matmul %51, %48, %cst_40 {dimension_numbers = #tpu.dot_dimension_numbers<[1], [0], [0], [1], [0, 0, 1, 1], [], []>} : vector<8x16xf32>, vector<16x64xf32>, vector<8x64xf32> -> vector<8x64xf32>
    %53 = arith.maximumf %50, %52 : vector<8x64xf32>
    %c480 = arith.constant 480 : index
    %c0_41 = arith.constant 0 : index
    %54 = vector.load %arg2[%c480, %c0_41] : memref<816x128xf32, #tpu.memory_space<vmem>>, vector<64x32xf32>
    %cst_42 = arith.constant dense<0.000000e+00> : vector<8x32xf32>
    %55 = tpu.matmul %53, %54, %cst_42 {dimension_numbers = #tpu.dot_dimension_numbers<[1], [0], [0], [1], [0, 0, 1, 1], [], []>} : vector<8x64xf32>, vector<64x32xf32>, vector<8x32xf32> -> vector<8x32xf32>
    %c544 = arith.constant 544 : index
    %c0_43 = arith.constant 0 : index
    %56 = vector.load %arg2[%c544, %c0_43] : memref<816x128xf32, #tpu.memory_space<vmem>>, vector<64x32xf32>
    %cst_44 = arith.constant dense<0.000000e+00> : vector<8x32xf32>
    %57 = tpu.matmul %53, %56, %cst_44 {dimension_numbers = #tpu.dot_dimension_numbers<[1], [0], [0], [1], [0, 0, 1, 1], [], []>} : vector<8x64xf32>, vector<64x32xf32>, vector<8x32xf32> -> vector<8x32xf32>
    %58 = arith.maximumf %55, %57 : vector<8x32xf32>
    %c608 = arith.constant 608 : index
    %c0_45 = arith.constant 0 : index
    %59 = vector.load %arg2[%c608, %c0_45] : memref<816x128xf32, #tpu.memory_space<vmem>>, vector<2x8xf32>
    %cst_46 = arith.constant dense<0.000000e+00> : vector<2x32xf32>
    %60 = tpu.matmul %59, %58, %cst_46 {dimension_numbers = #tpu.dot_dimension_numbers<[1], [0], [0], [1], [0, 0, 1, 1], [], []>} : vector<2x8xf32>, vector<8x32xf32>, vector<2x32xf32> -> vector<2x32xf32>
    %c616 = arith.constant 616 : index
    %c0_47 = arith.constant 0 : index
    %61 = vector.load %arg2[%c616, %c0_47] : memref<816x128xf32, #tpu.memory_space<vmem>>, vector<32x32xf32>
    %cst_48 = arith.constant dense<0.000000e+00> : vector<2x32xf32>
    %62 = tpu.matmul %60, %61, %cst_48 {dimension_numbers = #tpu.dot_dimension_numbers<[1], [0], [0], [1], [0, 0, 1, 1], [], []>} : vector<2x32xf32>, vector<32x32xf32>, vector<2x32xf32> -> vector<2x32xf32>
    %c648 = arith.constant 648 : index
    %c0_49 = arith.constant 0 : index
    %63 = vector.load %arg2[%c648, %c0_49] : memref<816x128xf32, #tpu.memory_space<vmem>>, vector<2x8xf32>
    %cst_50 = arith.constant dense<0.000000e+00> : vector<2x32xf32>
    %64 = tpu.matmul %63, %58, %cst_50 {dimension_numbers = #tpu.dot_dimension_numbers<[1], [0], [0], [1], [0, 0, 1, 1], [], []>} : vector<2x8xf32>, vector<8x32xf32>, vector<2x32xf32> -> vector<2x32xf32>
    %c656 = arith.constant 656 : index
    %c0_51 = arith.constant 0 : index
    %65 = vector.load %arg2[%c656, %c0_51] : memref<816x128xf32, #tpu.memory_space<vmem>>, vector<32x32xf32>
    %cst_52 = arith.constant dense<0.000000e+00> : vector<2x32xf32>
    %66 = tpu.matmul %64, %65, %cst_52 {dimension_numbers = #tpu.dot_dimension_numbers<[1], [0], [0], [1], [0, 0, 1, 1], [], []>} : vector<2x32xf32>, vector<32x32xf32>, vector<2x32xf32> -> vector<2x32xf32>
    %67 = arith.addf %62, %66 : vector<2x32xf32>
    %c688 = arith.constant 688 : index
    %c0_53 = arith.constant 0 : index
    %68 = vector.load %arg2[%c688, %c0_53] : memref<816x128xf32, #tpu.memory_space<vmem>>, vector<2x8xf32>
    %cst_54 = arith.constant dense<0.000000e+00> : vector<2x32xf32>
    %69 = tpu.matmul %68, %58, %cst_54 {dimension_numbers = #tpu.dot_dimension_numbers<[1], [0], [0], [1], [0, 0, 1, 1], [], []>} : vector<2x8xf32>, vector<8x32xf32>, vector<2x32xf32> -> vector<2x32xf32>
    %c696 = arith.constant 696 : index
    %c0_55 = arith.constant 0 : index
    %70 = vector.load %arg2[%c696, %c0_55] : memref<816x128xf32, #tpu.memory_space<vmem>>, vector<32x32xf32>
    %cst_56 = arith.constant dense<0.000000e+00> : vector<2x32xf32>
    %71 = tpu.matmul %69, %70, %cst_56 {dimension_numbers = #tpu.dot_dimension_numbers<[1], [0], [0], [1], [0, 0, 1, 1], [], []>} : vector<2x32xf32>, vector<32x32xf32>, vector<2x32xf32> -> vector<2x32xf32>
    %72 = arith.addf %67, %71 : vector<2x32xf32>
    %c728 = arith.constant 728 : index
    %c0_57 = arith.constant 0 : index
    %73 = vector.load %arg2[%c728, %c0_57] : memref<816x128xf32, #tpu.memory_space<vmem>>, vector<2x8xf32>
    %cst_58 = arith.constant dense<0.000000e+00> : vector<2x32xf32>
    %74 = tpu.matmul %73, %58, %cst_58 {dimension_numbers = #tpu.dot_dimension_numbers<[1], [0], [0], [1], [0, 0, 1, 1], [], []>} : vector<2x8xf32>, vector<8x32xf32>, vector<2x32xf32> -> vector<2x32xf32>
    %c736 = arith.constant 736 : index
    %c0_59 = arith.constant 0 : index
    %75 = vector.load %arg2[%c736, %c0_59] : memref<816x128xf32, #tpu.memory_space<vmem>>, vector<32x32xf32>
    %cst_60 = arith.constant dense<0.000000e+00> : vector<2x32xf32>
    %76 = tpu.matmul %74, %75, %cst_60 {dimension_numbers = #tpu.dot_dimension_numbers<[1], [0], [0], [1], [0, 0, 1, 1], [], []>} : vector<2x32xf32>, vector<32x32xf32>, vector<2x32xf32> -> vector<2x32xf32>
    %77 = arith.addf %72, %76 : vector<2x32xf32>
    %c768 = arith.constant 768 : index
    %c0_61 = arith.constant 0 : index
    %78 = vector.load %arg2[%c768, %c0_61] : memref<816x128xf32, #tpu.memory_space<vmem>>, vector<1x32xf32>
    %79 = vector.broadcast %78 : vector<1x32xf32> to vector<2x32xf32>
    %80 = arith.addf %77, %79 : vector<2x32xf32>
    %cst_62 = arith.constant 0.000000e+00 : f32
    %81 = vector.broadcast %cst_62 : f32 to vector<2x32xf32>
    %82 = arith.maximumf %80, %81 : vector<2x32xf32>
    %c776 = arith.constant 776 : index
    %c0_63 = arith.constant 0 : index
    %83 = vector.load %arg2[%c776, %c0_63] : memref<816x128xf32, #tpu.memory_space<vmem>>, vector<32x32xf32>
    %cst_64 = arith.constant dense<0.000000e+00> : vector<2x32xf32>
    %84 = tpu.matmul %82, %83, %cst_64 {dimension_numbers = #tpu.dot_dimension_numbers<[1], [0], [0], [1], [0, 0, 1, 1], [], []>} : vector<2x32xf32>, vector<32x32xf32>, vector<2x32xf32> -> vector<2x32xf32>
    %c808 = arith.constant 808 : index
    %c0_65 = arith.constant 0 : index
    %85 = vector.load %arg2[%c808, %c0_65] : memref<816x128xf32, #tpu.memory_space<vmem>>, vector<1x32xf32>
    %86 = vector.broadcast %85 : vector<1x32xf32> to vector<2x32xf32>
    %87 = arith.addf %84, %86 : vector<2x32xf32>
    %cst_66 = arith.constant 0.000000e+00 : f32
    %88 = vector.broadcast %cst_66 : f32 to vector<2x32xf32>
    %89 = arith.maximumf %87, %88 : vector<2x32xf32>
    %c0_67 = arith.constant 0 : index
    %c0_68 = arith.constant 0 : index
    %90 = vector.load %arg3[%c0_67, %c0_68] : memref<2x32xf32, #tpu.memory_space<vmem>>, vector<2x32xf32>
    tpu.vector_store %arg3[%c0_67, %c0_68], %89 {strides = array<i32>} : memref<2x32xf32, #tpu.memory_space<vmem>>, vector<2x32xf32>,
    return
  }
  func.func @transform_0(%arg0: i32) -> (i32, i32) {
    %c0_i32 = arith.constant 0 : i32
    %c0_i32_0 = arith.constant 0 : i32
    return %arg0, %c0_i32 : i32, i32
  }
  func.func @transform_1(%arg0: i32) -> (i32, i32) {
    %c0_i32 = arith.constant 0 : i32
    %c0_i32_0 = arith.constant 0 : i32
    %c0_i32_1 = arith.constant 0 : i32
    return %c0_i32, %c0_i32_0 : i32, i32
  }
  func.func @transform_2(%arg0: i32) -> (i32, i32) {
    %c0_i32 = arith.constant 0 : i32
    %c0_i32_0 = arith.constant 0 : i32
    return %arg0, %c0_i32 : i32, i32
  }
}

</mosaic_0001>

<llo_original>
// kernel: encoder_forward.1
$region0: #{encoder_forward.1}
  #allocation0 [shape = 'u32[]', space=smem, size = 0x4, offset = 0x4, fixed_abs, tag = 'smem constant byte address 0x4 - core index']
  #allocation1 [shape = 'u32[72,128]{1,0:T(1,128)}', space=vmem, size = 0x9000, scoped, tag = 'internal scratch']
  %s0 = inlined_call_operand.hbm [shape: f32[32,16], index: 0, kind: input, shape index: {}]
  %s1 = inlined_call_operand.hbm [shape: f32[816,128], index: 1, kind: input, shape index: {}]
  %s2 = inlined_call_operand.hbm [shape: f32[2,32], index: 2, kind: output, shape index: {}]
  %s3 = sld [smem:[#allocation0]]
  $region26: #{encoder_forward.1} parent=0
    _
  %s5 = ssub.s32 1, %s3
  %s6 = scalar_select 0, %s5, %s3
  $region1: #{encoder_forward.1} parent=0
    #allocation2 [shape = 'u8[16384]{0}', space=vmem, size = 0x4000, scoped, tag = 'input window, operand 0, single buffered']
    #allocation3 [shape = 's32[1]{0}', space=sflag, size = 0x4, scoped, tag = 'scoped memory for encoder_forward.1']
    #allocation4 [shape = 's32[1]{0}', space=sflag, size = 0x4, scoped, tag = 'scoped memory for encoder_forward.1']
    #allocation5 [shape = 'u8[417792]{0}', space=vmem, size = 0x66000, scoped, tag = 'input window, operand 1, single buffered']
    #allocation6 [shape = 's32[1]{0}', space=sflag, size = 0x4, scoped, tag = 'scoped memory for encoder_forward.1']
    #allocation7 [shape = 'u8[1024]{0}', space=vmem, size = 0x400, scoped, tag = 'output window, operand 0, single buffered']
    %7 = vsyncpa [#allocation3], 0
    %8 = vsyncpa [#allocation6], 0
    %9 = vsyncpa [#allocation4], 0
    // Predicated region
    $region2: #{encoder_forward.1} parent=1 // pred_check
      _
    $region3: #{encoder_forward.1} parent=1 // pred_check_branch
      %11 = sbr.rel (0) target = $region5
    $region4: #{encoder_forward.1} parent=1 // pred_region
      %13 = vsyncadd [#allocation3], 0
      %s14 = sshll.u32 %s0, 4
      %s15 = int_to_ptr.hbm [resolvable:$true] %s14
      %s16 = sshll.u32 [#allocation2], 4
      %s17 = int_to_ptr.vmem [resolvable:$true] %s16
      %22 = dma.hbm_to_vmem [thread:$0]  %s15, 512, %s17, [#allocation3], 128, 128, 8
    $region5: #{encoder_forward.1} parent=1 // pred_fallthru
      _
    // Predicated region
    $region6: #{encoder_forward.1} parent=1 // pred_check
      _
    $region7: #{encoder_forward.1} parent=1 // pred_check_branch
      %24 = sbr.rel (0) target = $region9
    $region8: #{encoder_forward.1} parent=1 // pred_region
      %26 = vsyncadd [#allocation6], 0
      %s27 = sshll.u32 %s1, 4
      %s28 = int_to_ptr.hbm [resolvable:$true] %s27
      %s29 = sshll.u32 [#allocation5], 4
      %s30 = int_to_ptr.vmem [resolvable:$true] %s29
      %35 = dma.hbm_to_vmem [thread:$0]  %s28, 13056, %s30, [#allocation6], 128, 128, 8
    $region9: #{encoder_forward.1} parent=1 // pred_fallthru
      _
    // Predicated region
    $region10: #{encoder_forward.1} parent=1 // pred_check
      _
    $region11: #{encoder_forward.1} parent=1 // pred_check_branch
      %37 = sbr.rel (0) target = $region13
    $region12: #{encoder_forward.1} parent=1 // pred_region
      %39 = dma.done [#allocation3], 512
    $region13: #{encoder_forward.1} parent=1 // pred_fallthru
      _
    // Predicated region
    $region14: #{encoder_forward.1} parent=1 // pred_check
      _
    $region15: #{encoder_forward.1} parent=1 // pred_check_branch
      %41 = sbr.rel (0) target = $region17
    $region16: #{encoder_forward.1} parent=1 // pred_region
      %43 = dma.done [#allocation6], 13056
    $region17: #{encoder_forward.1} parent=1 // pred_fallthru
      _
    %v44 = vld [vmem:[#allocation2] sm:$0xff]
    %v45 = vld [vmem:[#allocation2 + $0x8] sm:$0xff]
    %v46 = vld [vmem:[#allocation2 + $0x10] sm:$0xff]
    %v47 = vld [vmem:[#allocation2 + $0x18] sm:$0xff]
    %v48 = vld [vmem:[#allocation5] sm:$0xff]
    %v49 = vld [vmem:[#allocation5 + $0x8] sm:$0xff]
    %v50 = vld [vmem:[#allocation5 + $0x10] sm:$0xff]
    %v51 = vld [vmem:[#allocation5 + $0x18] sm:$0xff]
    %vm52 = vcmask 261120
    %v54 = vsel %vm52, %v48, 0
    %v57 = vsel %vm52, %v49, 0
    %v60 = vsel %vm52, %v50, 0
    %v63 = vsel %vm52, %v51, 0
    %65 = vmatpush.msra.mxu0 0.0
    %66 = vmatpush.msra.mxu0 0.0
    %67 = vmatpush.msra.mxu0 0.0
    %68 = vmatpush.msra.mxu0 0.0
    %69 = vmatpush.msra.mxu0 0.0
    %70 = vmatpush.msra.mxu0 0.0
    %71 = vmatpush.msra.mxu0 0.0
    %72 = vmatpush.msra.mxu0 0.0
    %73 = vmatpush.msra.mxu0 0.0
    %74 = vmatpush.msra.mxu0 0.0
    %75 = vmatpush.msra.mxu0 0.0
    %76 = vmatpush.msra.mxu0 0.0
    %77 = vmatpush.msra.mxu0 %v47
    %78 = vmatpush.msra.mxu0 %v46
    %79 = vmatpush.msra.mxu0 %v45
    %80 = vmatpush.msra.mxu0 %v44
    %81 = vmatmul.f32.gmra.mxu0 %v54
    %v82 = vpop.f32.mrf.mxu0
    %v83 = vadd.f32 0.0, %v82
    %84 = vmatmul.f32.gmra.mxu0 %v57
    %v85 = vpop.f32.mrf.mxu0
    %v86 = vadd.f32 0.0, %v85
    %87 = vmatmul.f32.gmra.mxu0 %v60
    %v88 = vpop.f32.mrf.mxu0
    %v89 = vadd.f32 0.0, %v88
    %90 = vmatmul.f32.gmra.mxu0 %v63
    %v91 = vpop.f32.mrf.mxu0
    %v92 = vadd.f32 0.0, %v91
    %93 = vdwg.mxu0
    %v94 = vld [vmem:[#allocation5 + $0x20] sm:$0xff]
    %v95 = vld [vmem:[#allocation5 + $0x28] sm:$0xff]
    %v96 = vld [vmem:[#allocation5 + $0x30] sm:$0xff]
    %v97 = vld [vmem:[#allocation5 + $0x38] sm:$0xff]
    %v98 = vld [vmem:[#allocation5 + $0x40] sm:$0xff]
    %v99 = vld [vmem:[#allocation5 + $0x48] sm:$0xff]
    %v101 = vsel %vm52, %v96, 0
    %v104 = vsel %vm52, %v97, 0
    %v107 = vsel %vm52, %v98, 0
    %v110 = vsel %vm52, %v99, 0
    %112 = vmatpush.msra.mxu0 0.0
    %113 = vmatpush.msra.mxu0 0.0
    %114 = vmatpush.msra.mxu0 0.0
    %115 = vmatpush.msra.mxu0 0.0
    %116 = vmatpush.msra.mxu0 0.0
    %117 = vmatpush.msra.mxu0 0.0
    %118 = vmatpush.msra.mxu0 0.0
    %119 = vmatpush.msra.mxu0 0.0
    %120 = vmatpush.msra.mxu0 0.0
    %121 = vmatpush.msra.mxu0 0.0
    %122 = vmatpush.msra.mxu0 0.0
    %123 = vmatpush.msra.mxu0 0.0
    %124 = vmatpush.msra.mxu0 %v47
    %125 = vmatpush.msra.mxu0 %v46
    %126 = vmatpush.msra.mxu0 %v45
    %127 = vmatpush.msra.mxu0 %v44
    %128 = vmatmul.f32.gmra.mxu0 %v101
    %v129 = vpop.f32.mrf.mxu0
    %v130 = vadd.f32 0.0, %v129
    %131 = vmatmul.f32.gmra.mxu0 %v104
    %v132 = vpop.f32.mrf.mxu0
    %v133 = vadd.f32 0.0, %v132
    %134 = vmatmul.f32.gmra.mxu0 %v107
    %v135 = vpop.f32.mrf.mxu0
    %v136 = vadd.f32 0.0, %v135
    %137 = vmatmul.f32.gmra.mxu0 %v110
    %v138 = vpop.f32.mrf.mxu0
    %v139 = vadd.f32 0.0, %v138
    %140 = vdwg.mxu0
    %v141 = vld [vmem:[#allocation5 + $0x50] sm:$0xff]
    %v142 = vld [vmem:[#allocation5 + $0x58] sm:$0xff]
    %vm143 = vcmask 130048
    %v145 = vsel %vm143, %v130, 0
    %v148 = vsel %vm143, %v133, 0
    %v151 = vsel %vm143, %v136, 0
    %v154 = vsel %vm143, %v139, 0
    %156 = vmatpush.msra.mxu0 0.0
    %157 = vmatpush.msra.mxu0 0.0
    %158 = vmatpush.msra.mxu0 0.0
    %159 = vmatpush.msra.mxu0 0.0
    %160 = vmatpush.msra.mxu0 0.0
    %161 = vmatpush.msra.mxu0 0.0
    %162 = vmatpush.msra.mxu0 0.0
    %163 = vmatpush.msra.mxu0 0.0
    %164 = vmatpush.msra.mxu0 0.0
    %165 = vmatpush.msra.mxu0 0.0
    %166 = vmatpush.msra.mxu0 0.0
    %167 = vmatpush.msra.mxu0 0.0
    %168 = vmatpush.msra.mxu0 0.0
    %169 = vmatpush.msra.mxu0 0.0
    %170 = vmatpush.msra.mxu0 %v142
    %171 = vmatpush.msra.mxu0 %v141
    %172 = vmatmul.f32.gmra.mxu0 %v145
    %v173 = vpop.f32.mrf.mxu0
    %v174 = vadd.f32 0.0, %v173
    %175 = vmatmul.f32.gmra.mxu0 %v148
    %v176 = vpop.f32.mrf.mxu0
    %v177 = vadd.f32 0.0, %v176
    %178 = vmatmul.f32.gmra.mxu0 %v151
    %v179 = vpop.f32.mrf.mxu0
    %v180 = vadd.f32 0.0, %v179
    %181 = vmatmul.f32.gmra.mxu0 %v154
    %v182 = vpop.f32.mrf.mxu0
    %v183 = vadd.f32 0.0, %v182
    %184 = vdwg.mxu0
    %v186 = vsel %vm143, %v83, 0
    %v189 = vsel %vm143, %v86, 0
    %v192 = vsel %vm143, %v89, 0
    %v195 = vsel %vm143, %v92, 0
    %197 = vmatpush.msra.mxu0 0.0
    %198 = vmatpush.msra.mxu0 0.0
    %199 = vmatpush.msra.mxu0 0.0
    %200 = vmatpush.msra.mxu0 0.0
    %201 = vmatpush.msra.mxu0 0.0
    %202 = vmatpush.msra.mxu0 0.0
    %203 = vmatpush.msra.mxu0 0.0
    %204 = vmatpush.msra.mxu0 0.0
    %205 = vmatpush.msra.mxu0 0.0
    %206 = vmatpush.msra.mxu0 0.0
    %207 = vmatpush.msra.mxu0 0.0
    %208 = vmatpush.msra.mxu0 0.0
    %209 = vmatpush.msra.mxu0 0.0
    %210 = vmatpush.msra.mxu0 0.0
    %211 = vmatpush.msra.mxu0 %v95
    %212 = vmatpush.msra.mxu0 %v94
    %213 = vmatmul.f32.gmra.mxu0 %v186
    %v214 = vpop.f32.mrf.mxu0
    %v215 = vadd.f32 %v174, %v214
    %216 = vmatmul.f32.gmra.mxu0 %v189
    %v217 = vpop.f32.mrf.mxu0
    %v218 = vadd.f32 %v177, %v217
    %219 = vmatmul.f32.gmra.mxu0 %v192
    %v220 = vpop.f32.mrf.mxu0
    %v221 = vadd.f32 %v180, %v220
    %222 = vmatmul.f32.gmra.mxu0 %v195
    %v223 = vpop.f32.mrf.mxu0
    %v224 = vadd.f32 %v183, %v223
    %225 = vdwg.mxu0
    %v226 = vld [vmem:[#allocation5 + $0x60] sm:$0xff]
    %v227 = vld [vmem:[#allocation5 + $0x68] sm:$0xff]
    %v228 = vld [vmem:[#allocation5 + $0x70] sm:$0xff]
    %v229 = vld [vmem:[#allocation5 + $0x78] sm:$0xff]
    %v231 = vsel %vm52, %v226, 0
    %v234 = vsel %vm52, %v227, 0
    %v237 = vsel %vm52, %v228, 0
    %v240 = vsel %vm52, %v229, 0
    %242 = vmatpush.msra.mxu0 0.0
    %243 = vmatpush.msra.mxu0 0.0
    %244 = vmatpush.msra.mxu0 0.0
    %245 = vmatpush.msra.mxu0 0.0
    %246 = vmatpush.msra.mxu0 0.0
    %247 = vmatpush.msra.mxu0 0.0
    %248 = vmatpush.msra.mxu0 0.0
    %249 = vmatpush.msra.mxu0 0.0
    %250 = vmatpush.msra.mxu0 0.0
    %251 = vmatpush.msra.mxu0 0.0
    %252 = vmatpush.msra.mxu0 0.0
    %253 = vmatpush.msra.mxu0 0.0
    %254 = vmatpush.msra.mxu0 %v47
    %255 = vmatpush.msra.mxu0 %v46
    %256 = vmatpush.msra.mxu0 %v45
    %257 = vmatpush.msra.mxu0 %v44
    %258 = vmatmul.f32.gmra.mxu0 %v231
    %v259 = vpop.f32.mrf.mxu0
    %v260 = vadd.f32 0.0, %v259
    %261 = vmatmul.f32.gmra.mxu0 %v234
    %v262 = vpop.f32.mrf.mxu0
    %v263 = vadd.f32 0.0, %v262
    %264 = vmatmul.f32.gmra.mxu0 %v237
    %v265 = vpop.f32.mrf.mxu0
    %v266 = vadd.f32 0.0, %v265
    %267 = vmatmul.f32.gmra.mxu0 %v240
    %v268 = vpop.f32.mrf.mxu0
    %v269 = vadd.f32 0.0, %v268
    %270 = vdwg.mxu0
    %v271 = vld [vmem:[#allocation5 + $0x80] sm:$0xff]
    %v272 = vld [vmem:[#allocation5 + $0x88] sm:$0xff]
    %v274 = vsel %vm143, %v260, 0
    %v277 = vsel %vm143, %v263, 0
    %v280 = vsel %vm143, %v266, 0
    %v283 = vsel %vm143, %v269, 0
    %285 = vmatpush.msra.mxu0 0.0
    %286 = vmatpush.msra.mxu0 0.0
    %287 = vmatpush.msra.mxu0 0.0
    %288 = vmatpush.msra.mxu0 0.0
    %289 = vmatpush.msra.mxu0 0.0
    %290 = vmatpush.msra.mxu0 0.0
    %291 = vmatpush.msra.mxu0 0.0
    %292 = vmatpush.msra.mxu0 0.0
    %293 = vmatpush.msra.mxu0 0.0
    %294 = vmatpush.msra.mxu0 0.0
    %295 = vmatpush.msra.mxu0 0.0
    %296 = vmatpush.msra.mxu0 0.0
    %297 = vmatpush.msra.mxu0 0.0
    %298 = vmatpush.msra.mxu0 0.0
    %299 = vmatpush.msra.mxu0 %v272
    %300 = vmatpush.msra.mxu0 %v271
    %301 = vmatmul.f32.gmra.mxu0 %v274
    %v302 = vpop.f32.mrf.mxu0
    %v303 = vadd.f32 0.0, %v302
    %304 = vmatmul.f32.gmra.mxu0 %v277
    %v305 = vpop.f32.mrf.mxu0
    %v306 = vadd.f32 0.0, %v305
    %307 = vmatmul.f32.gmra.mxu0 %v280
    %v308 = vpop.f32.mrf.mxu0
    %v309 = vadd.f32 0.0, %v308
    %310 = vmatmul.f32.gmra.mxu0 %v283
    %v311 = vpop.f32.mrf.mxu0
    %v312 = vadd.f32 0.0, %v311
    %313 = vdwg.mxu0
    %v314 = vadd.f32 %v215, %v303
    %v315 = vadd.f32 %v218, %v306
    %v316 = vadd.f32 %v221, %v309
    %v317 = vadd.f32 %v224, %v312
    %v318 = vld [vmem:[#allocation5 + $0x90] sm:$0x1]
    %v319 = vperm.slane %v318, 0
    %v320 = vadd.f32 %v314, %v319
    %v321 = vadd.f32 %v315, %v319
    %v322 = vadd.f32 %v316, %v319
    %v323 = vadd.f32 %v317, %v319
    %v324 = vmax.f32 %v320, 0.0
    %v325 = vmax.f32 %v321, 0.0
    %v326 = vmax.f32 %v322, 0.0
    %v327 = vmax.f32 %v323, 0.0
    %v328 = vld [vmem:[#allocation5 + $0x98] sm:$0xff]
    %v329 = vld [vmem:[#allocation5 + $0xa0] sm:$0xff]
    %v331 = vsel %vm52, %v328, 0
    %v334 = vsel %vm52, %v329, 0
    %336 = vmatpush.msra.mxu0 0.0
    %337 = vmatpush.msra.mxu0 0.0
    %338 = vmatpush.msra.mxu0 0.0
    %339 = vmatpush.msra.mxu0 0.0
    %340 = vmatpush.msra.mxu0 0.0
    %341 = vmatpush.msra.mxu0 0.0
    %342 = vmatpush.msra.mxu0 0.0
    %343 = vmatpush.msra.mxu0 0.0
    %344 = vmatpush.msra.mxu0 0.0
    %345 = vmatpush.msra.mxu0 0.0
    %346 = vmatpush.msra.mxu0 0.0
    %347 = vmatpush.msra.mxu0 0.0
    %348 = vmatpush.msra.mxu0 %v327
    %349 = vmatpush.msra.mxu0 %v326
    %350 = vmatpush.msra.mxu0 %v325
    %351 = vmatpush.msra.mxu0 %v324
    %352 = vmatmul.f32.gmra.mxu0 %v331
    %v353 = vpop.f32.mrf.mxu0
    %v354 = vadd.f32 0.0, %v353
    %355 = vmatmul.f32.gmra.mxu0 %v334
    %v356 = vpop.f32.mrf.mxu0
    %v357 = vadd.f32 0.0, %v356
    %358 = vdwg.mxu0
    %v359 = vld [vmem:[#allocation5 + $0xa8] sm:$0xff]
    %v360 = vld [vmem:[#allocation5 + $0xb0] sm:$0xff]
    %v362 = vsel %vm52, %v359, 0
    %v365 = vsel %vm52, %v360, 0
    %367 = vmatpush.msra.mxu0 0.0
    %368 = vmatpush.msra.mxu0 0.0
    %369 = vmatpush.msra.mxu0 0.0
    %370 = vmatpush.msra.mxu0 0.0
    %371 = vmatpush.msra.mxu0 0.0
    %372 = vmatpush.msra.mxu0 0.0
    %373 = vmatpush.msra.mxu0 0.0
    %374 = vmatpush.msra.mxu0 0.0
    %375 = vmatpush.msra.mxu0 0.0
    %376 = vmatpush.msra.mxu0 0.0
    %377 = vmatpush.msra.mxu0 0.0
    %378 = vmatpush.msra.mxu0 0.0
    %379 = vmatpush.msra.mxu0 %v327
    %380 = vmatpush.msra.mxu0 %v326
    %381 = vmatpush.msra.mxu0 %v325
    %382 = vmatpush.msra.mxu0 %v324
    %383 = vmatmul.f32.gmra.mxu0 %v362
    %v384 = vpop.f32.mrf.mxu0
    %v385 = vadd.f32 0.0, %v384
    %386 = vmatmul.f32.gmra.mxu0 %v365
    %v387 = vpop.f32.mrf.mxu0
    %v388 = vadd.f32 0.0, %v387
    %389 = vdwg.mxu0
    %v390 = vmax.f32 %v354, %v385
    %v391 = vmax.f32 %v357, %v388
    %v392 = vld [vmem:[#allocation5 + $0xb8] sm:$0xff]
    %v393 = vld [vmem:[#allocation5 + $0xc0] sm:$0xff]
    %v394 = vld [vmem:[#allocation5 + $0xc8] sm:$0xff]
    %v395 = vld [vmem:[#allocation5 + $0xd0] sm:$0xff]
    %v396 = vld [vmem:[#allocation5 + $0xd8] sm:$0xff]
    %v397 = vld [vmem:[#allocation5 + $0xe0] sm:$0xff]
    %v398 = vld [vmem:[#allocation5 + $0xe8] sm:$0xff]
    %v399 = vld [vmem:[#allocation5 + $0xf0] sm:$0xff]
    %vm400 = vcmask 523264
    %v402 = vsel %vm400, %v390, 0
    %v405 = vsel %vm400, %v391, 0
    %407 = vmatpush.msra.mxu0 0.0
    %408 = vmatpush.msra.mxu0 0.0
    %409 = vmatpush.msra.mxu0 0.0
    %410 = vmatpush.msra.mxu0 0.0
    %411 = vmatpush.msra.mxu0 0.0
    %412 = vmatpush.msra.mxu0 0.0
    %413 = vmatpush.msra.mxu0 0.0
    %414 = vmatpush.msra.mxu0 0.0
    %415 = vmatpush.msra.mxu0 %v399
    %416 = vmatpush.msra.mxu0 %v398
    %417 = vmatpush.msra.mxu0 %v397
    %418 = vmatpush.msra.mxu0 %v396
    %419 = vmatpush.msra.mxu0 %v395
    %420 = vmatpush.msra.mxu0 %v394
    %421 = vmatpush.msra.mxu0 %v393
    %422 = vmatpush.msra.mxu0 %v392
    %423 = vmatmul.f32.gmra.mxu0 %v402
    %v424 = vpop.f32.mrf.mxu0
    %v425 = vadd.f32 0.0, %v424
    %426 = vmatmul.f32.gmra.mxu0 %v405
    %v427 = vpop.f32.mrf.mxu0
    %v428 = vadd.f32 0.0, %v427
    %429 = vdwg.mxu0
    %v430 = vld [vmem:[#allocation5 + $0xf8] sm:$0xff]
    %v431 = vld [vmem:[#allocation5 + $0x100] sm:$0xff]
    %v432 = vld [vmem:[#allocation5 + $0x108] sm:$0xff]
    %v433 = vld [vmem:[#allocation5 + $0x110] sm:$0xff]
    %v434 = vld [vmem:[#allocation5 + $0x118] sm:$0xff]
    %v435 = vld [vmem:[#allocation5 + $0x120] sm:$0xff]
    %v436 = vld [vmem:[#allocation5 + $0x128] sm:$0xff]
    %v437 = vld [vmem:[#allocation5 + $0x130] sm:$0xff]
    %438 = vmatpush.msra.mxu0 0.0
    %439 = vmatpush.msra.mxu0 0.0
    %440 = vmatpush.msra.mxu0 0.0
    %441 = vmatpush.msra.mxu0 0.0
    %442 = vmatpush.msra.mxu0 0.0
    %443 = vmatpush.msra.mxu0 0.0
    %444 = vmatpush.msra.mxu0 0.0
    %445 = vmatpush.msra.mxu0 0.0
    %446 = vmatpush.msra.mxu0 %v437
    %447 = vmatpush.msra.mxu0 %v436
    %448 = vmatpush.msra.mxu0 %v435
    %449 = vmatpush.msra.mxu0 %v434
    %450 = vmatpush.msra.mxu0 %v433
    %451 = vmatpush.msra.mxu0 %v432
    %452 = vmatpush.msra.mxu0 %v431
    %453 = vmatpush.msra.mxu0 %v430
    %454 = vmatmul.f32.gmra.mxu0 %v402
    %v455 = vpop.f32.mrf.mxu0
    %v456 = vadd.f32 0.0, %v455
    %457 = vmatmul.f32.gmra.mxu0 %v405
    %v458 = vpop.f32.mrf.mxu0
    %v459 = vadd.f32 0.0, %v458
    %460 = vdwg.mxu0
    %v461 = vmax.f32 %v425, %v456
    %v462 = vmax.f32 %v428, %v459
    %v463 = vld [vmem:[#allocation5 + $0x138] sm:$0xff]
    %v464 = vld [vmem:[#allocation5 + $0x140] sm:$0xff]
    %v466 = vsel %vm143, %v463, 0
    %v469 = vsel %vm143, %v464, 0
    %471 = vmatpush.msra.mxu0 0.0
    %472 = vmatpush.msra.mxu0 0.0
    %473 = vmatpush.msra.mxu0 0.0
    %474 = vmatpush.msra.mxu0 0.0
    %475 = vmatpush.msra.mxu0 0.0
    %476 = vmatpush.msra.mxu0 0.0
    %477 = vmatpush.msra.mxu0 0.0
    %478 = vmatpush.msra.mxu0 0.0
    %479 = vmatpush.msra.mxu0 0.0
    %480 = vmatpush.msra.mxu0 0.0
    %481 = vmatpush.msra.mxu0 0.0
    %482 = vmatpush.msra.mxu0 0.0
    %483 = vmatpush.msra.mxu0 0.0
    %484 = vmatpush.msra.mxu0 0.0
    %485 = vmatpush.msra.mxu0 %v462
    %486 = vmatpush.msra.mxu0 %v461
    %487 = vmatmul.f32.gmra.mxu0 %v466
    %v488 = vpop.f32.mrf.mxu0
    %v489 = vadd.f32 0.0, %v488
    %490 = vmatmul.f32.gmra.mxu0 %v469
    %v491 = vpop.f32.mrf.mxu0
    %v492 = vadd.f32 0.0, %v491
    %493 = vdwg.mxu0
    %v494 = vld [vmem:[#allocation5 + $0x148] sm:$0xff]
    %v495 = vld [vmem:[#allocation5 + $0x150] sm:$0xff]
    %v496 = vld [vmem:[#allocation5 + $0x158] sm:$0xff]
    %v497 = vld [vmem:[#allocation5 + $0x160] sm:$0xff]
    %v498 = vld [vmem:[#allocation5 + $0x168] sm:$0xff]
    %v499 = vld [vmem:[#allocation5 + $0x170] sm:$0xff]
    %v501 = vsel %vm143, %v498, 0
    %v504 = vsel %vm143, %v499, 0
    %506 = vmatpush.msra.mxu0 0.0
    %507 = vmatpush.msra.mxu0 0.0
    %508 = vmatpush.msra.mxu0 0.0
    %509 = vmatpush.msra.mxu0 0.0
    %510 = vmatpush.msra.mxu0 0.0
    %511 = vmatpush.msra.mxu0 0.0
    %512 = vmatpush.msra.mxu0 0.0
    %513 = vmatpush.msra.mxu0 0.0
    %514 = vmatpush.msra.mxu0 0.0
    %515 = vmatpush.msra.mxu0 0.0
    %516 = vmatpush.msra.mxu0 0.0
    %517 = vmatpush.msra.mxu0 0.0
    %518 = vmatpush.msra.mxu0 0.0
    %519 = vmatpush.msra.mxu0 0.0
    %520 = vmatpush.msra.mxu0 %v462
    %521 = vmatpush.msra.mxu0 %v461
    %522 = vmatmul.f32.gmra.mxu0 %v501
    %v523 = vpop.f32.mrf.mxu0
    %v524 = vadd.f32 0.0, %v523
    %525 = vmatmul.f32.gmra.mxu0 %v504
    %v526 = vpop.f32.mrf.mxu0
    %v527 = vadd.f32 0.0, %v526
    %528 = vdwg.mxu0
    %v529 = vld [vmem:[#allocation5 + $0x178] sm:$0xff]
    %v530 = vld [vmem:[#allocation5 + $0x180] sm:$0xff]
    %v531 = vld [vmem:[#allocation5 + $0x188] sm:$0xff]
    %v532 = vld [vmem:[#allocation5 + $0x190] sm:$0xff]
    %v534 = vsel %vm52, %v524, 0
    %v537 = vsel %vm52, %v527, 0
    %539 = vmatpush.msra.mxu0 0.0
    %540 = vmatpush.msra.mxu0 0.0
    %541 = vmatpush.msra.mxu0 0.0
    %542 = vmatpush.msra.mxu0 0.0
    %543 = vmatpush.msra.mxu0 0.0
    %544 = vmatpush.msra.mxu0 0.0
    %545 = vmatpush.msra.mxu0 0.0
    %546 = vmatpush.msra.mxu0 0.0
    %547 = vmatpush.msra.mxu0 0.0
    %548 = vmatpush.msra.mxu0 0.0
    %549 = vmatpush.msra.mxu0 0.0
    %550 = vmatpush.msra.mxu0 0.0
    %551 = vmatpush.msra.mxu0 %v532
    %552 = vmatpush.msra.mxu0 %v531
    %553 = vmatpush.msra.mxu0 %v530
    %554 = vmatpush.msra.mxu0 %v529
    %555 = vmatmul.f32.gmra.mxu0 %v534
    %v556 = vpop.f32.mrf.mxu0
    %v557 = vadd.f32 0.0, %v556
    %558 = vmatmul.f32.gmra.mxu0 %v537
    %v559 = vpop.f32.mrf.mxu0
    %v560 = vadd.f32 0.0, %v559
    %561 = vdwg.mxu0
    %v563 = vsel %vm52, %v489, 0
    %v566 = vsel %vm52, %v492, 0
    %568 = vmatpush.msra.mxu0 0.0
    %569 = vmatpush.msra.mxu0 0.0
    %570 = vmatpush.msra.mxu0 0.0
    %571 = vmatpush.msra.mxu0 0.0
    %572 = vmatpush.msra.mxu0 0.0
    %573 = vmatpush.msra.mxu0 0.0
    %574 = vmatpush.msra.mxu0 0.0
    %575 = vmatpush.msra.mxu0 0.0
    %576 = vmatpush.msra.mxu0 0.0
    %577 = vmatpush.msra.mxu0 0.0
    %578 = vmatpush.msra.mxu0 0.0
    %579 = vmatpush.msra.mxu0 0.0
    %580 = vmatpush.msra.mxu0 %v497
    %581 = vmatpush.msra.mxu0 %v496
    %582 = vmatpush.msra.mxu0 %v495
    %583 = vmatpush.msra.mxu0 %v494
    %584 = vmatmul.f32.gmra.mxu0 %v563
    %v585 = vpop.f32.mrf.mxu0
    %v586 = vadd.f32 %v557, %v585
    %587 = vmatmul.f32.gmra.mxu0 %v566
    %v588 = vpop.f32.mrf.mxu0
    %v589 = vadd.f32 %v560, %v588
    %590 = vdwg.mxu0
    %v591 = vld [vmem:[#allocation5 + $0x198] sm:$0xff]
    %v592 = vld [vmem:[#allocation5 + $0x1a0] sm:$0xff]
    %v594 = vsel %vm143, %v591, 0
    %v597 = vsel %vm143, %v592, 0
    %599 = vmatpush.msra.mxu0 0.0
    %600 = vmatpush.msra.mxu0 0.0
    %601 = vmatpush.msra.mxu0 0.0
    %602 = vmatpush.msra.mxu0 0.0
    %603 = vmatpush.msra.mxu0 0.0
    %604 = vmatpush.msra.mxu0 0.0
    %605 = vmatpush.msra.mxu0 0.0
    %606 = vmatpush.msra.mxu0 0.0
    %607 = vmatpush.msra.mxu0 0.0
    %608 = vmatpush.msra.mxu0 0.0
    %609 = vmatpush.msra.mxu0 0.0
    %610 = vmatpush.msra.mxu0 0.0
    %611 = vmatpush.msra.mxu0 0.0
    %612 = vmatpush.msra.mxu0 0.0
    %613 = vmatpush.msra.mxu0 %v462
    %614 = vmatpush.msra.mxu0 %v461
    %615 = vmatmul.f32.gmra.mxu0 %v594
    %v616 = vpop.f32.mrf.mxu0
    %v617 = vadd.f32 0.0, %v616
    %618 = vmatmul.f32.gmra.mxu0 %v597
    %v619 = vpop.f32.mrf.mxu0
    %v620 = vadd.f32 0.0, %v619
    %621 = vdwg.mxu0
    %v622 = vld [vmem:[#allocation5 + $0x1a8] sm:$0xff]
    %v623 = vld [vmem:[#allocation5 + $0x1b0] sm:$0xff]
    %v624 = vld [vmem:[#allocation5 + $0x1b8] sm:$0xff]
    %v625 = vld [vmem:[#allocation5 + $0x1c0] sm:$0xff]
    %v627 = vsel %vm52, %v617, 0
    %v630 = vsel %vm52, %v620, 0
    %632 = vmatpush.msra.mxu0 0.0
    %633 = vmatpush.msra.mxu0 0.0
    %634 = vmatpush.msra.mxu0 0.0
    %635 = vmatpush.msra.mxu0 0.0
    %636 = vmatpush.msra.mxu0 0.0
    %637 = vmatpush.msra.mxu0 0.0
    %638 = vmatpush.msra.mxu0 0.0
    %639 = vmatpush.msra.mxu0 0.0
    %640 = vmatpush.msra.mxu0 0.0
    %641 = vmatpush.msra.mxu0 0.0
    %642 = vmatpush.msra.mxu0 0.0
    %643 = vmatpush.msra.mxu0 0.0
    %644 = vmatpush.msra.mxu0 %v625
    %645 = vmatpush.msra.mxu0 %v624
    %646 = vmatpush.msra.mxu0 %v623
    %647 = vmatpush.msra.mxu0 %v622
    %648 = vmatmul.f32.gmra.mxu0 %v627
    %v649 = vpop.f32.mrf.mxu0
    %v650 = vadd.f32 0.0, %v649
    %651 = vmatmul.f32.gmra.mxu0 %v630
    %v652 = vpop.f32.mrf.mxu0
    %v653 = vadd.f32 0.0, %v652
    %654 = vdwg.mxu0
    %v655 = vadd.f32 %v586, %v650
    %v656 = vadd.f32 %v589, %v653
    %v657 = vld [vmem:[#allocation5 + $0x1c8] sm:$0x1]
    %v658 = vperm.slane %v657, 0
    %v659 = vadd.f32 %v655, %v658
    %v660 = vadd.f32 %v656, %v658
    %v661 = vmax.f32 %v659, 0.0
    %v662 = vmax.f32 %v660, 0.0
    %v663 = vld [vmem:[#allocation5 + $0x1d0] sm:$0xff]
    %v665 = vsel %vm143, %v663, 0
    %667 = vmatpush.msra.mxu0 0.0
    %668 = vmatpush.msra.mxu0 0.0
    %669 = vmatpush.msra.mxu0 0.0
    %670 = vmatpush.msra.mxu0 0.0
    %671 = vmatpush.msra.mxu0 0.0
    %672 = vmatpush.msra.mxu0 0.0
    %673 = vmatpush.msra.mxu0 0.0
    %674 = vmatpush.msra.mxu0 0.0
    %675 = vmatpush.msra.mxu0 0.0
    %676 = vmatpush.msra.mxu0 0.0
    %677 = vmatpush.msra.mxu0 0.0
    %678 = vmatpush.msra.mxu0 0.0
    %679 = vmatpush.msra.mxu0 0.0
    %680 = vmatpush.msra.mxu0 0.0
    %681 = vmatpush.msra.mxu0 %v662
    %682 = vmatpush.msra.mxu0 %v661
    %683 = vmatmul.f32.gmra.mxu0 %v665
    %v684 = vpop.f32.mrf.mxu0
    %v685 = vadd.f32 0.0, %v684
    %686 = vdwg.mxu0
    %v687 = vld [vmem:[#allocation5 + $0x1d8] sm:$0xff]
    %v689 = vsel %vm143, %v687, 0
    %691 = vmatpush.msra.mxu0 0.0
    %692 = vmatpush.msra.mxu0 0.0
    %693 = vmatpush.msra.mxu0 0.0
    %694 = vmatpush.msra.mxu0 0.0
    %695 = vmatpush.msra.mxu0 0.0
    %696 = vmatpush.msra.mxu0 0.0
    %697 = vmatpush.msra.mxu0 0.0
    %698 = vmatpush.msra.mxu0 0.0
    %699 = vmatpush.msra.mxu0 0.0
    %700 = vmatpush.msra.mxu0 0.0
    %701 = vmatpush.msra.mxu0 0.0
    %702 = vmatpush.msra.mxu0 0.0
    %703 = vmatpush.msra.mxu0 0.0
    %704 = vmatpush.msra.mxu0 0.0
    %705 = vmatpush.msra.mxu0 %v662
    %706 = vmatpush.msra.mxu0 %v661
    %707 = vmatmul.f32.gmra.mxu0 %v689
    %v708 = vpop.f32.mrf.mxu0
    %v709 = vadd.f32 0.0, %v708
    %710 = vdwg.mxu0
    %v711 = vmax.f32 %v685, %v709
    %v712 = vld [vmem:[#allocation5 + $0x1e0] sm:$0xff]
    %v713 = vld [vmem:[#allocation5 + $0x1e8] sm:$0xff]
    %v714 = vld [vmem:[#allocation5 + $0x1f0] sm:$0xff]
    %v715 = vld [vmem:[#allocation5 + $0x1f8] sm:$0xff]
    %v716 = vld [vmem:[#allocation5 + $0x200] sm:$0xff]
    %v717 = vld [vmem:[#allocation5 + $0x208] sm:$0xff]
    %v718 = vld [vmem:[#allocation5 + $0x210] sm:$0xff]
    %v719 = vld [vmem:[#allocation5 + $0x218] sm:$0xff]
    %v721 = vsel %vm400, %v711, 0
    %723 = vmatpush.msra.mxu0 0.0
    %724 = vmatpush.msra.mxu0 0.0
    %725 = vmatpush.msra.mxu0 0.0
    %726 = vmatpush.msra.mxu0 0.0
    %727 = vmatpush.msra.mxu0 0.0
    %728 = vmatpush.msra.mxu0 0.0
    %729 = vmatpush.msra.mxu0 0.0
    %730 = vmatpush.msra.mxu0 0.0
    %731 = vmatpush.msra.mxu0 %v719
    %732 = vmatpush.msra.mxu0 %v718
    %733 = vmatpush.msra.mxu0 %v717
    %734 = vmatpush.msra.mxu0 %v716
    %735 = vmatpush.msra.mxu0 %v715
    %736 = vmatpush.msra.mxu0 %v714
    %737 = vmatpush.msra.mxu0 %v713
    %738 = vmatpush.msra.mxu0 %v712
    %739 = vmatmul.f32.gmra.mxu0 %v721
    %v740 = vpop.f32.mrf.mxu0
    %v741 = vadd.f32 0.0, %v740
    %742 = vdwg.mxu0
    %v743 = vld [vmem:[#allocation5 + $0x220] sm:$0xff]
    %v744 = vld [vmem:[#allocation5 + $0x228] sm:$0xff]
    %v745 = vld [vmem:[#allocation5 + $0x230] sm:$0xff]
    %v746 = vld [vmem:[#allocation5 + $0x238] sm:$0xff]
    %v747 = vld [vmem:[#allocation5 + $0x240] sm:$0xff]
    %v748 = vld [vmem:[#allocation5 + $0x248] sm:$0xff]
    %v749 = vld [vmem:[#allocation5 + $0x250] sm:$0xff]
    %v750 = vld [vmem:[#allocation5 + $0x258] sm:$0xff]
    %751 = vmatpush.msra.mxu0 0.0
    %752 = vmatpush.msra.mxu0 0.0
    %753 = vmatpush.msra.mxu0 0.0
    %754 = vmatpush.msra.mxu0 0.0
    %755 = vmatpush.msra.mxu0 0.0
    %756 = vmatpush.msra.mxu0 0.0
    %757 = vmatpush.msra.mxu0 0.0
    %758 = vmatpush.msra.mxu0 0.0
    %759 = vmatpush.msra.mxu0 %v750
    %760 = vmatpush.msra.mxu0 %v749
    %761 = vmatpush.msra.mxu0 %v748
    %762 = vmatpush.msra.mxu0 %v747
    %763 = vmatpush.msra.mxu0 %v746
    %764 = vmatpush.msra.mxu0 %v745
    %765 = vmatpush.msra.mxu0 %v744
    %766 = vmatpush.msra.mxu0 %v743
    %767 = vmatmul.f32.gmra.mxu0 %v721
    %v768 = vpop.f32.mrf.mxu0
    %v769 = vadd.f32 0.0, %v768
    %770 = vdwg.mxu0
    %v771 = vmax.f32 %v741, %v769
    %v772 = vld [vmem:[#allocation5 + $0x260] sm:$0x3]
    %vm773 = vcmask 64512
    %v775 = vsel %vm773, %v772, 0
    %777 = vmatpush.msra.mxu0 0.0
    %778 = vmatpush.msra.mxu0 0.0
    %779 = vmatpush.msra.mxu0 0.0
    %780 = vmatpush.msra.mxu0 0.0
    %781 = vmatpush.msra.mxu0 0.0
    %782 = vmatpush.msra.mxu0 0.0
    %783 = vmatpush.msra.mxu0 0.0
    %784 = vmatpush.msra.mxu0 0.0
    %785 = vmatpush.msra.mxu0 0.0
    %786 = vmatpush.msra.mxu0 0.0
    %787 = vmatpush.msra.mxu0 0.0
    %788 = vmatpush.msra.mxu0 0.0
    %789 = vmatpush.msra.mxu0 0.0
    %790 = vmatpush.msra.mxu0 0.0
    %791 = vmatpush.msra.mxu0 0.0
    %792 = vmatpush.msra.mxu0 %v771
    %793 = vmatmul.f32.gmra.mxu0 %v775
    %v794 = vpop.f32.mrf.mxu0
    %v795 = vadd.f32 0.0, %v794
    %796 = vdwg.mxu0
    %v797 = vld [vmem:[#allocation5 + $0x268] sm:$0xff]
    %v798 = vld [vmem:[#allocation5 + $0x270] sm:$0xff]
    %v799 = vld [vmem:[#allocation5 + $0x278] sm:$0xff]
    %v800 = vld [vmem:[#allocation5 + $0x280] sm:$0xff]
    %v801 = vld [vmem:[#allocation5 + $0x288] sm:$0x3]
    %v803 = vsel %vm773, %v801, 0
    %805 = vmatpush.msra.mxu0 0.0
    %806 = vmatpush.msra.mxu0 0.0
    %807 = vmatpush.msra.mxu0 0.0
    %808 = vmatpush.msra.mxu0 0.0
    %809 = vmatpush.msra.mxu0 0.0
    %810 = vmatpush.msra.mxu0 0.0
    %811 = vmatpush.msra.mxu0 0.0
    %812 = vmatpush.msra.mxu0 0.0
    %813 = vmatpush.msra.mxu0 0.0
    %814 = vmatpush.msra.mxu0 0.0
    %815 = vmatpush.msra.mxu0 0.0
    %816 = vmatpush.msra.mxu0 0.0
    %817 = vmatpush.msra.mxu0 0.0
    %818 = vmatpush.msra.mxu0 0.0
    %819 = vmatpush.msra.mxu0 0.0
    %820 = vmatpush.msra.mxu0 %v771
    %821 = vmatmul.f32.gmra.mxu0 %v803
    %v822 = vpop.f32.mrf.mxu0
    %v823 = vadd.f32 0.0, %v822
    %824 = vdwg.mxu0
    %v825 = vld [vmem:[#allocation5 + $0x290] sm:$0xff]
    %v826 = vld [vmem:[#allocation5 + $0x298] sm:$0xff]
    %v827 = vld [vmem:[#allocation5 + $0x2a0] sm:$0xff]
    %v828 = vld [vmem:[#allocation5 + $0x2a8] sm:$0xff]
    %v830 = vsel %vm52, %v823, 0
    %832 = vmatpush.msra.mxu0 0.0
    %833 = vmatpush.msra.mxu0 0.0
    %834 = vmatpush.msra.mxu0 0.0
    %835 = vmatpush.msra.mxu0 0.0
    %836 = vmatpush.msra.mxu0 0.0
    %837 = vmatpush.msra.mxu0 0.0
    %838 = vmatpush.msra.mxu0 0.0
    %839 = vmatpush.msra.mxu0 0.0
    %840 = vmatpush.msra.mxu0 0.0
    %841 = vmatpush.msra.mxu0 0.0
    %842 = vmatpush.msra.mxu0 0.0
    %843 = vmatpush.msra.mxu0 0.0
    %844 = vmatpush.msra.mxu0 %v828
    %845 = vmatpush.msra.mxu0 %v827
    %846 = vmatpush.msra.mxu0 %v826
    %847 = vmatpush.msra.mxu0 %v825
    %848 = vmatmul.f32.gmra.mxu0 %v830
    %v849 = vpop.f32.mrf.mxu0
    %v850 = vadd.f32 0.0, %v849
    %851 = vdwg.mxu0
    %v853 = vsel %vm52, %v795, 0
    %855 = vmatpush.msra.mxu0 0.0
    %856 = vmatpush.msra.mxu0 0.0
    %857 = vmatpush.msra.mxu0 0.0
    %858 = vmatpush.msra.mxu0 0.0
    %859 = vmatpush.msra.mxu0 0.0
    %860 = vmatpush.msra.mxu0 0.0
    %861 = vmatpush.msra.mxu0 0.0
    %862 = vmatpush.msra.mxu0 0.0
    %863 = vmatpush.msra.mxu0 0.0
    %864 = vmatpush.msra.mxu0 0.0
    %865 = vmatpush.msra.mxu0 0.0
    %866 = vmatpush.msra.mxu0 0.0
    %867 = vmatpush.msra.mxu0 %v800
    %868 = vmatpush.msra.mxu0 %v799
    %869 = vmatpush.msra.mxu0 %v798
    %870 = vmatpush.msra.mxu0 %v797
    %871 = vmatmul.f32.gmra.mxu0 %v853
    %v872 = vpop.f32.mrf.mxu0
    %v873 = vadd.f32 %v850, %v872
    %874 = vdwg.mxu0
    %v875 = vld [vmem:[#allocation5 + $0x2b0] sm:$0x3]
    %v877 = vsel %vm773, %v875, 0
    %879 = vmatpush.msra.mxu0 0.0
    %880 = vmatpush.msra.mxu0 0.0
    %881 = vmatpush.msra.mxu0 0.0
    %882 = vmatpush.msra.mxu0 0.0
    %883 = vmatpush.msra.mxu0 0.0
    %884 = vmatpush.msra.mxu0 0.0
    %885 = vmatpush.msra.mxu0 0.0
    %886 = vmatpush.msra.mxu0 0.0
    %887 = vmatpush.msra.mxu0 0.0
    %888 = vmatpush.msra.mxu0 0.0
    %889 = vmatpush.msra.mxu0 0.0
    %890 = vmatpush.msra.mxu0 0.0
    %891 = vmatpush.msra.mxu0 0.0
    %892 = vmatpush.msra.mxu0 0.0
    %893 = vmatpush.msra.mxu0 0.0
    %894 = vmatpush.msra.mxu0 %v771
    %895 = vmatmul.f32.gmra.mxu0 %v877
    %v896 = vpop.f32.mrf.mxu0
    %v897 = vadd.f32 0.0, %v896
    %898 = vdwg.mxu0
    %v899 = vld [vmem:[#allocation5 + $0x2b8] sm:$0xff]
    %v900 = vld [vmem:[#allocation5 + $0x2c0] sm:$0xff]
    %v901 = vld [vmem:[#allocation5 + $0x2c8] sm:$0xff]
    %v902 = vld [vmem:[#allocation5 + $0x2d0] sm:$0xff]
    %v904 = vsel %vm52, %v897, 0
    %906 = vmatpush.msra.mxu0 0.0
    %907 = vmatpush.msra.mxu0 0.0
    %908 = vmatpush.msra.mxu0 0.0
    %909 = vmatpush.msra.mxu0 0.0
    %910 = vmatpush.msra.mxu0 0.0
    %911 = vmatpush.msra.mxu0 0.0
    %912 = vmatpush.msra.mxu0 0.0
    %913 = vmatpush.msra.mxu0 0.0
    %914 = vmatpush.msra.mxu0 0.0
    %915 = vmatpush.msra.mxu0 0.0
    %916 = vmatpush.msra.mxu0 0.0
    %917 = vmatpush.msra.mxu0 0.0
    %918 = vmatpush.msra.mxu0 %v902
    %919 = vmatpush.msra.mxu0 %v901
    %920 = vmatpush.msra.mxu0 %v900
    %921 = vmatpush.msra.mxu0 %v899
    %922 = vmatmul.f32.gmra.mxu0 %v904
    %v923 = vpop.f32.mrf.mxu0
    %v924 = vadd.f32 0.0, %v923
    %925 = vdwg.mxu0
    %v926 = vadd.f32 %v873, %v924
    %v927 = vld [vmem:[#allocation5 + $0x2d8] sm:$0x3]
    %v929 = vsel %vm773, %v927, 0
    %931 = vmatpush.msra.mxu0 0.0
    %932 = vmatpush.msra.mxu0 0.0
    %933 = vmatpush.msra.mxu0 0.0
    %934 = vmatpush.msra.mxu0 0.0
    %935 = vmatpush.msra.mxu0 0.0
    %936 = vmatpush.msra.mxu0 0.0
    %937 = vmatpush.msra.mxu0 0.0
    %938 = vmatpush.msra.mxu0 0.0
    %939 = vmatpush.msra.mxu0 0.0
    %940 = vmatpush.msra.mxu0 0.0
    %941 = vmatpush.msra.mxu0 0.0
    %942 = vmatpush.msra.mxu0 0.0
    %943 = vmatpush.msra.mxu0 0.0
    %944 = vmatpush.msra.mxu0 0.0
    %945 = vmatpush.msra.mxu0 0.0
    %946 = vmatpush.msra.mxu0 %v771
    %947 = vmatmul.f32.gmra.mxu0 %v929
    %v948 = vpop.f32.mrf.mxu0
    %v949 = vadd.f32 0.0, %v948
    %950 = vdwg.mxu0
    %v951 = vld [vmem:[#allocation5 + $0x2e0] sm:$0xff]
    %v952 = vld [vmem:[#allocation5 + $0x2e8] sm:$0xff]
    %v953 = vld [vmem:[#allocation5 + $0x2f0] sm:$0xff]
    %v954 = vld [vmem:[#allocation5 + $0x2f8] sm:$0xff]
    %v956 = vsel %vm52, %v949, 0
    %958 = vmatpush.msra.mxu0 0.0
    %959 = vmatpush.msra.mxu0 0.0
    %960 = vmatpush.msra.mxu0 0.0
    %961 = vmatpush.msra.mxu0 0.0
    %962 = vmatpush.msra.mxu0 0.0
    %963 = vmatpush.msra.mxu0 0.0
    %964 = vmatpush.msra.mxu0 0.0
    %965 = vmatpush.msra.mxu0 0.0
    %966 = vmatpush.msra.mxu0 0.0
    %967 = vmatpush.msra.mxu0 0.0
    %968 = vmatpush.msra.mxu0 0.0
    %969 = vmatpush.msra.mxu0 0.0
    %970 = vmatpush.msra.mxu0 %v954
    %971 = vmatpush.msra.mxu0 %v953
    %972 = vmatpush.msra.mxu0 %v952
    %973 = vmatpush.msra.mxu0 %v951
    %974 = vmatmul.f32.gmra.mxu0 %v956
    %v975 = vpop.f32.mrf.mxu0
    %v976 = vadd.f32 0.0, %v975
    %977 = vdwg.mxu0
    %v978 = vadd.f32 %v926, %v976
    %v979 = vld [vmem:[#allocation5 + $0x300] sm:$0x1]
    %v980 = vperm.slane %v979, 0
    %v981 = vadd.f32 %v978, %v980
    %v982 = vmax.f32 %v981, 0.0
    %v983 = vld [vmem:[#allocation5 + $0x308] sm:$0xff]
    %v984 = vld [vmem:[#allocation5 + $0x310] sm:$0xff]
    %v985 = vld [vmem:[#allocation5 + $0x318] sm:$0xff]
    %v986 = vld [vmem:[#allocation5 + $0x320] sm:$0xff]
    %v987 = vld [vmem:[#allocation5 + $0x328] sm:$0x1]
    %v988 = vperm.slane %v987, 0
    %v990 = vsel %vm52, %v982, 0
    %992 = vmatpush.msra.mxu0 0.0
    %993 = vmatpush.msra.mxu0 0.0
    %994 = vmatpush.msra.mxu0 0.0
    %995 = vmatpush.msra.mxu0 0.0
    %996 = vmatpush.msra.mxu0 0.0
    %997 = vmatpush.msra.mxu0 0.0
    %998 = vmatpush.msra.mxu0 0.0
    %999 = vmatpush.msra.mxu0 0.0
    %1000 = vmatpush.msra.mxu0 0.0
    %1001 = vmatpush.msra.mxu0 0.0
    %1002 = vmatpush.msra.mxu0 0.0
    %1003 = vmatpush.msra.mxu0 0.0
    %1004 = vmatpush.msra.mxu0 %v986
    %1005 = vmatpush.msra.mxu0 %v985
    %1006 = vmatpush.msra.mxu0 %v984
    %1007 = vmatpush.msra.mxu0 %v983
    %1008 = vmatmul.f32.gmra.mxu0 %v990
    %v1009 = vpop.f32.mrf.mxu0
    %v1010 = vadd.f32 %v988, %v1009
    %1011 = vdwg.mxu0
    %v1012 = vmax.f32 %v1010, 0.0
    %vm1013 = vcmask 254976
    %1014 = vst.msk [vmem:[#allocation7] sm:$0x3] %vm1013, %v1012
    // Predicated region
    $region18: #{encoder_forward.1} parent=1 // pred_check
      _
    $region19: #{encoder_forward.1} parent=1 // pred_check_branch
      %1016 = sbr.rel (0) target = $region21
    $region20: #{encoder_forward.1} parent=1 // pred_region
      %1018 = vsyncadd [#allocation4], 0
      %s1020 = sshll.u32 [#allocation7], 4
      %s1021 = int_to_ptr.vmem [resolvable:$true] %s1020
      %s1022 = sshll.u32 %s2, 4
      %s1023 = int_to_ptr.hbm [resolvable:$true] %s1022
      %1025 = dma.vmem_to_hbm [thread:$0]  %s1021, 32, %s1023, [#allocation4]
    $region21: #{encoder_forward.1} parent=1 // pred_fallthru
      _
    // Predicated region
    $region22: #{encoder_forward.1} parent=1 // pred_check
      _
    $region23: #{encoder_forward.1} parent=1 // pred_check_branch
      %1027 = sbr.rel (0) target = $region25
    $region24: #{encoder_forward.1} parent=1 // pred_region
      %1029 = dma.done [#allocation4], 32
    $region25: #{encoder_forward.1} parent=1 // pred_fallthru
      _
    %1030 = vsyncpa [#allocation3], 1
    %1031 = vsyncpa [#allocation6], 1
    %1032 = vsyncpa [#allocation4], 1

</llo_original>
